<compile_context>
chip_gen: v6e
topology: v6e:2x2x1
jax: 0.10.0
libtpu: 0.0.40
codegen_flags: <defaults>
</compile_context>

<pallas_src>
import jax
import jax.numpy as jnp
from jax.experimental import pallas as pl
from jax.experimental.pallas import tpu as pltpu


def _mpve_kernel(mkt_t_ref, enc_ref, bal_ref, o_ref):
    # mkt_t_ref: (F_aug, N)  rows 0..F-1 = market^T, row F = ones, rest zeros
    # enc_ref:   (C, F_aug)  cols 0..F-1 = w_enc^T, col F = b_enc, rest zeros
    # bal_ref:   (8, H)      row0 = w1[0], row1 = w1[1], row2 = b1,
    #                        row3 = w2^T, row4[0] = b2, rows 5..7 = padding
    # o_ref:     (1, 1)
    n = mkt_t_ref.shape[1]                                        # static N

    # pressure encoder (bias folded in): logits^T = W_aug @ X_aug  -> (C, N)
    logits_t = jnp.dot(enc_ref[...], mkt_t_ref[...],
                       preferred_element_type=jnp.float32,
                       precision=jax.lax.Precision.HIGHEST)        # (C, N)

    # argmax(logits, axis=classes) restricted to "is it class 0 / class 1":
    # class c wins iff its logit attains the column max (first occurrence).
    col_max = jnp.max(logits_t, axis=0, keepdims=True)             # (1, N) sublane max
    is0 = (logits_t[0:1, :] >= col_max).astype(jnp.float32)        # (1, N)
    is1 = (logits_t[1:2, :] >= col_max).astype(jnp.float32) * (1.0 - is0)

    inv_n = 1.0 / n
    supply = jnp.sum(is0, axis=1, keepdims=True) * inv_n           # (1, 1) lane reduce
    demand = jnp.sum(is1, axis=1, keepdims=True) * inv_n           # (1, 1)

    # balancer MLP on the 2-vector (supply, demand): fold the (1,2)@(2,H)
    # matmul into scalar*vector VPU ops, ReLU, then a lane reduction for H->1.
    # TODO(synk): NacMlp's exact cell (NAC weights) is not defined in the spec;
    # a Linear-ReLU-Linear MLP is used as the concrete balancer.
    w1s = bal_ref[0:1, :]
    w1d = bal_ref[1:2, :]
    b1 = bal_ref[2:3, :]
    w2t = bal_ref[3:4, :]
    b2 = bal_ref[4:5, 0:1]
    h = supply * w1s + demand * w1d + b1                           # (1, H)
    h = jnp.maximum(h, 0.0)
    y = jnp.sum(h * w2t, axis=1, keepdims=True) + b2               # (1, 1)
    o_ref[...] = y.astype(o_ref.dtype)


def market_participant_valuation(market, w_enc, b_enc, w1, b1, w2, b2):
    """market: (N, F) -> scalar market-balance valuation, shape (1,)."""
    N, F = market.shape
    C = w_enc.shape[1]
    H = w1.shape[1]
    F_aug = ((F + 1 + 7) // 8) * 8          # append ones-row for bias, pad to x8

    # Transposed, bias-folded market / encoder slabs (one DMA each).
    mkt_t = (jnp.zeros((F_aug, N), jnp.float32)
             .at[:F, :].set(market.T)
             .at[F, :].set(1.0))
    enc = (jnp.zeros((C, F_aug), jnp.float32)
           .at[:, :F].set(w_enc.T)
           .at[:, F].set(b_enc))

    # Pack all five tiny balancer params into one (8, H) slab (one DMA).
    bal = (jnp.zeros((8, H), jnp.float32)
           .at[0, :].set(w1[0])             # layer-1 supply row
           .at[1, :].set(w1[1])             # layer-1 demand row
           .at[2, :].set(b1)                # layer-1 bias
           .at[3, :].set(w2[:, 0])          # layer-2 weight, transposed
           .at[4, 0].set(b2[0]))            # layer-2 bias

    cost = pl.CostEstimate(
        flops=2 * C * F_aug * N + 8 * N + 6 * H,
        transcendentals=0,
        bytes_accessed=4 * (mkt_t.size + enc.size + bal.size + 1),
    )

    out = pl.pallas_call(
        _mpve_kernel,
        out_shape=jax.ShapeDtypeStruct((1, 1), jnp.float32),
        # No grid: single invocation, whole arrays resident in VMEM,
        # no pipeline setup and no double-buffering.
        in_specs=[
            pl.BlockSpec(memory_space=pltpu.MemorySpace.VMEM),   # market^T (aug)
            pl.BlockSpec(memory_space=pltpu.MemorySpace.VMEM),   # encoder slab
            pl.BlockSpec(memory_space=pltpu.MemorySpace.VMEM),   # balancer slab
        ],
        out_specs=pl.BlockSpec(memory_space=pltpu.MemorySpace.VMEM),
        cost_estimate=cost,
    )(mkt_t, enc, bal)

    # torch: balancer(tensor((supply, demand))) on a 1-D input -> shape (1,)
    return out.reshape(1)


def market_participant_valuation_ref(market, w_enc, b_enc, w1, b1, w2, b2):
    # Pure-JAX reference mirroring the torch forward loop.
    p_e = jnp.dot(market, w_enc, precision=jax.lax.Precision.HIGHEST) + b_enc
    labels = jnp.argmax(p_e, axis=1)
    n = p_e.shape[0]
    supply = jnp.sum(labels == 0).astype(jnp.float32) / n
    demand = jnp.sum(labels == 1).astype(jnp.float32) / n
    sd = jnp.stack([supply, demand])
    h = jnp.maximum(sd @ w1 + b1, 0.0)
    return h @ w2 + b2            # shape (1,)


if __name__ == "__main__":
    # Small, module-consistent shapes.
    n_participants = 128   # N (rows of the market tensor; lane-dense logits^T)
    n_features = 32        # F (market features per participant)
    n_classes = 8          # C (pressure classes; >= 2 for supply/demand)
    hidden = 32            # H (balancer MLP hidden width)

    key = jax.random.PRNGKey(0)
    k0, k1, k2, k3, k4, k5, k6 = jax.random.split(key, 7)

    market = jax.random.normal(k0, (n_participants, n_features), jnp.float32)
    # Deterministic synthetic parameters.
    w_enc = jax.random.normal(k1, (n_features, n_classes), jnp.float32) * 0.2
    b_enc = jax.random.normal(k2, (n_classes,), jnp.float32) * 0.1
    w1 = jax.random.normal(k3, (2, hidden), jnp.float32) * 0.5
    b1 = jax.random.normal(k4, (hidden,), jnp.float32) * 0.1
    w2 = jax.random.normal(k5, (hidden, 1), jnp.float32) * 0.5
    b2 = jax.random.normal(k6, (1,), jnp.float32) * 0.1

    out = market_participant_valuation(market, w_enc, b_enc, w1, b1, w2, b2)
    out = jax.block_until_ready(out)

    ref = market_participant_valuation_ref(market, w_enc, b_enc, w1, b1, w2, b2)
    assert out.shape == (1,), out.shape
    assert jnp.allclose(out, ref, atol=1e-5, rtol=1e-5), (out, ref)

    print("KERNEL_OK")
</pallas_src>

<mosaic_0001>
module attributes {stable_mosaic.version = 11 : i64} {
  func.func @_mpve_kernel(%arg0: memref<40x128xf32, #tpu.memory_space<vmem>>, %arg1: memref<8x40xf32, #tpu.memory_space<vmem>>, %arg2: memref<8x32xf32, #tpu.memory_space<vmem>>, %arg3: memref<1x1xf32, #tpu.memory_space<vmem>>) attributes {dimension_semantics = [], scalar_prefetch = 0 : i64, scratch_operands = 0 : i64, tpu.core_type = #tpu.core_type<tc>} {
    %c0 = arith.constant 0 : index
    %c0_0 = arith.constant 0 : index
    %0 = vector.load %arg1[%c0, %c0_0] : memref<8x40xf32, #tpu.memory_space<vmem>>, vector<8x40xf32>
    %c0_1 = arith.constant 0 : index
    %c0_2 = arith.constant 0 : index
    %1 = vector.load %arg0[%c0_1, %c0_2] : memref<40x128xf32, #tpu.memory_space<vmem>>, vector<40x128xf32>
    %cst = arith.constant dense<0.000000e+00> : vector<8x128xf32>
    %2 = tpu.matmul %0, %1, %cst {dimension_numbers = #tpu.dot_dimension_numbers<[1], [0], [0], [1], [0, 0, 1, 1], [], []>, precision = #tpu.contract_precision<fp32>} : vector<8x40xf32>, vector<40x128xf32>, vector<8x128xf32> -> vector<8x128xf32>
    %cst_3 = arith.constant dense<0xFF800000> : vector<128xf32>
    %3 = vector.multi_reduction <maximumf>, %2, %cst_3 [0] : vector<8x128xf32> to vector<128xf32>
    %4 = vector.shape_cast %3 : vector<128xf32> to vector<1x128xf32>
    %5 = vector.extract_strided_slice %2 {offsets = [0, 0], sizes = [1, 128], strides = [1, 1]} : vector<8x128xf32> to vector<1x128xf32>
    %6 = arith.cmpf oge, %5, %4 : vector<1x128xf32>
    %7 = arith.extui %6 : vector<1x128xi1> to vector<1x128xi32>
    %8 = arith.sitofp %7 : vector<1x128xi32> to vector<1x128xf32>
    %9 = vector.extract_strided_slice %2 {offsets = [1, 0], sizes = [1, 128], strides = [1, 1]} : vector<8x128xf32> to vector<1x128xf32>
    %10 = arith.cmpf oge, %9, %4 : vector<1x128xf32>
    %11 = arith.extui %10 : vector<1x128xi1> to vector<1x128xi32>
    %12 = arith.sitofp %11 : vector<1x128xi32> to vector<1x128xf32>
    %cst_4 = arith.constant 1.000000e+00 : f32
    %13 = vector.broadcast %cst_4 : f32 to vector<1x128xf32>
    %14 = arith.subf %13, %8 : vector<1x128xf32>
    %15 = arith.mulf %12, %14 : vector<1x128xf32>
    %cst_5 = arith.constant dense<0.000000e+00> : vector<1xf32>
    %16 = vector.multi_reduction <add>, %8, %cst_5 [1] : vector<1x128xf32> to vector<1xf32>
    %17 = vector.shape_cast %16 : vector<1xf32> to vector<1x1xf32>
    %cst_6 = arith.constant 7.812500e-03 : f32
    %18 = vector.broadcast %cst_6 : f32 to vector<1x1xf32>
    %19 = arith.mulf %17, %18 : vector<1x1xf32>
    %cst_7 = arith.constant dense<0.000000e+00> : vector<1xf32>
    %20 = vector.multi_reduction <add>, %15, %cst_7 [1] : vector<1x128xf32> to vector<1xf32>
    %21 = vector.shape_cast %20 : vector<1xf32> to vector<1x1xf32>
    %cst_8 = arith.constant 7.812500e-03 : f32
    %22 = vector.broadcast %cst_8 : f32 to vector<1x1xf32>
    %23 = arith.mulf %21, %22 : vector<1x1xf32>
    %c0_9 = arith.constant 0 : index
    %c0_10 = arith.constant 0 : index
    %24 = vector.load %arg2[%c0_9, %c0_10] : memref<8x32xf32, #tpu.memory_space<vmem>>, vector<1x32xf32>
    %c1 = arith.constant 1 : index
    %c0_11 = arith.constant 0 : index
    %25 = vector.load %arg2[%c1, %c0_11] : memref<8x32xf32, #tpu.memory_space<vmem>>, vector<1x32xf32>
    %c2 = arith.constant 2 : index
    %c0_12 = arith.constant 0 : index
    %26 = vector.load %arg2[%c2, %c0_12] : memref<8x32xf32, #tpu.memory_space<vmem>>, vector<1x32xf32>
    %c3 = arith.constant 3 : index
    %c0_13 = arith.constant 0 : index
    %27 = vector.load %arg2[%c3, %c0_13] : memref<8x32xf32, #tpu.memory_space<vmem>>, vector<1x32xf32>
    %c4 = arith.constant 4 : index
    %c0_14 = arith.constant 0 : index
    %28 = vector.load %arg2[%c4, %c0_14] : memref<8x32xf32, #tpu.memory_space<vmem>>, vector<1x1xf32>
    %29 = vector.broadcast %19 : vector<1x1xf32> to vector<1x32xf32>
    %30 = arith.mulf %29, %24 : vector<1x32xf32>
    %31 = vector.broadcast %23 : vector<1x1xf32> to vector<1x32xf32>
    %32 = arith.mulf %31, %25 : vector<1x32xf32>
    %33 = arith.addf %30, %32 : vector<1x32xf32>
    %34 = arith.addf %33, %26 : vector<1x32xf32>
    %cst_15 = arith.constant 0.000000e+00 : f32
    %35 = vector.broadcast %cst_15 : f32 to vector<1x32xf32>
    %36 = arith.maximumf %34, %35 : vector<1x32xf32>
    %37 = arith.mulf %36, %27 : vector<1x32xf32>
    %cst_16 = arith.constant dense<0.000000e+00> : vector<1xf32>
    %38 = vector.multi_reduction <add>, %37, %cst_16 [1] : vector<1x32xf32> to vector<1xf32>
    %39 = vector.shape_cast %38 : vector<1xf32> to vector<1x1xf32>
    %40 = arith.addf %39, %28 : vector<1x1xf32>
    %c0_17 = arith.constant 0 : index
    %c0_18 = arith.constant 0 : index
    %41 = vector.load %arg3[%c0_17, %c0_18] : memref<1x1xf32, #tpu.memory_space<vmem>>, vector<1x1xf32>
    tpu.vector_store %arg3[%c0_17, %c0_18], %40 {strides = array<i32>} : memref<1x1xf32, #tpu.memory_space<vmem>>, vector<1x1xf32>,
    return
  }
}

</mosaic_0001>

<llo_original>
// kernel: tpu_custom_call.1
$region0: #{tpu_custom_call.1}
  #allocation0 [shape = 'u32[]', space=smem, size = 0x4, offset = 0x4, fixed_abs, tag = 'smem constant byte address 0x4 - core index']
  #allocation1 [shape = 'u32[144,128]{1,0:T(1,128)}', space=vmem, size = 0x12000, scoped, tag = 'internal scratch']
  %s0 = inlined_call_operand.hbm [shape: f32[40,128], index: 0, kind: input, shape index: {}]
  %s1 = inlined_call_operand.hbm [shape: f32[8,40], index: 1, kind: input, shape index: {}]
  %s2 = inlined_call_operand.hbm [shape: f32[8,32], index: 2, kind: input, shape index: {}]
  %s3 = inlined_call_operand.hbm [shape: f32[1,1], index: 3, kind: output, shape index: {}]
  %s4 = sld [smem:[#allocation0]]
  $region34: #{tpu_custom_call.1} parent=0
    _
  %s6 = ssub.s32 1, %s4
  %s7 = scalar_select 0, %s6, %s4
  $region1: #{tpu_custom_call.1} parent=0
    #allocation2 [shape = 'u8[20480]{0}', space=vmem, size = 0x5000, scoped, tag = 'input window, operand 0, single buffered']
    #allocation3 [shape = 's32[1]{0}', space=sflag, size = 0x4, scoped, tag = 'scoped memory for tpu_custom_call.1']
    #allocation4 [shape = 's32[1]{0}', space=sflag, size = 0x4, scoped, tag = 'scoped memory for tpu_custom_call.1']
    #allocation5 [shape = 'u8[4096]{0}', space=vmem, size = 0x1000, scoped, tag = 'input window, operand 1, single buffered']
    #allocation6 [shape = 's32[1]{0}', space=sflag, size = 0x4, scoped, tag = 'scoped memory for tpu_custom_call.1']
    #allocation7 [shape = 'u8[4096]{0}', space=vmem, size = 0x1000, scoped, tag = 'input window, operand 2, single buffered']
    #allocation8 [shape = 'u8[512]{0}', space=vmem, size = 0x400, scoped, tag = 'output window, operand 0, single buffered']
    %8 = vsyncpa [#allocation3], 0
    %9 = vsyncpa [#allocation6], 0
    %10 = vsyncpa [#allocation4], 0
    // Predicated region
    $region2: #{tpu_custom_call.1} parent=1 // pred_check
      _
    $region3: #{tpu_custom_call.1} parent=1 // pred_check_branch
      %12 = sbr.rel (0) target = $region5
    $region4: #{tpu_custom_call.1} parent=1 // pred_region
      %s14 = ssub.s32 640, 640
      %15 = vsyncadd [#allocation3], %s14
      %s16 = sshll.u32 [#allocation2], 4
      %s17 = int_to_ptr.vmem [resolvable:$true] %s16
      %22 = dma.hbm_to_vmem [thread:$0]  %s0, 640, %s17, [#allocation3], 128, 128, 8
    $region5: #{tpu_custom_call.1} parent=1 // pred_fallthru
      _
    // Predicated region
    $region6: #{tpu_custom_call.1} parent=1 // pred_check
      _
    $region7: #{tpu_custom_call.1} parent=1 // pred_check_branch
      %24 = sbr.rel (0) target = $region9
    $region8: #{tpu_custom_call.1} parent=1 // pred_region
      %s26 = ssub.s32 128, 128
      %27 = vsyncadd [#allocation6], %s26
      %s29 = sshll.u32 [#allocation5], 4
      %s30 = int_to_ptr.vmem [resolvable:$true] %s29
      %32 = dma.hbm_to_vmem [thread:$0]  %s1, 128, %s30, [#allocation6]
    $region9: #{tpu_custom_call.1} parent=1 // pred_fallthru
      _
    // Predicated region
    $region10: #{tpu_custom_call.1} parent=1 // pred_check
      _
    $region11: #{tpu_custom_call.1} parent=1 // pred_check_branch
      %34 = sbr.rel (0) target = $region13
    $region12: #{tpu_custom_call.1} parent=1 // pred_region
      %s36 = ssub.s32 128, 128
      %37 = vsyncadd [#allocation6], %s36
      %s39 = sshll.u32 [#allocation7], 4
      %s40 = int_to_ptr.vmem [resolvable:$true] %s39
      %42 = dma.hbm_to_vmem [thread:$0]  %s2, 128, %s40, [#allocation6]
    $region13: #{tpu_custom_call.1} parent=1 // pred_fallthru
      _
    // Predicated region
    $region14: #{tpu_custom_call.1} parent=1 // pred_check
      _
    $region15: #{tpu_custom_call.1} parent=1 // pred_check_branch
      %44 = sbr.rel (0) target = $region17
    $region16: #{tpu_custom_call.1} parent=1 // pred_region
      %45 = dma.done [#allocation3], 640
    $region17: #{tpu_custom_call.1} parent=1 // pred_fallthru
      _
    // Predicated region
    $region18: #{tpu_custom_call.1} parent=1 // pred_check
      _
    $region19: #{tpu_custom_call.1} parent=1 // pred_check_branch
      %47 = sbr.rel (0) target = $region21
    $region20: #{tpu_custom_call.1} parent=1 // pred_region
      %48 = dma.done [#allocation6], 128
    $region21: #{tpu_custom_call.1} parent=1 // pred_fallthru
      _
    // Predicated region
    $region22: #{tpu_custom_call.1} parent=1 // pred_check
      _
    $region23: #{tpu_custom_call.1} parent=1 // pred_check_branch
      %50 = sbr.rel (0) target = $region25
    $region24: #{tpu_custom_call.1} parent=1 // pred_region
      %51 = dma.done [#allocation6], 128
    $region25: #{tpu_custom_call.1} parent=1 // pred_fallthru
      _
    %v52 = vld [vmem:[#allocation5] sm:$0xff]
    %v53 = vld [vmem:[#allocation2] sm:$0xff]
    %v54 = vld [vmem:[#allocation2 + $0x8] sm:$0xff]
    %v55 = vld [vmem:[#allocation2 + $0x10] sm:$0xff]
    %v56 = vld [vmem:[#allocation2 + $0x18] sm:$0xff]
    %v57 = vld [vmem:[#allocation2 + $0x20] sm:$0xff]
    %vm58 = vcmask 326656
    %v60 = vsel %vm58, %v52, 0
    %62 = vmatprep.subr.mxu0 0.0
    %63 = vmatpush1.msra.mxu0 0.0
    %64 = vmatprep.subr.mxu0 0.0
    %65 = vmatpush1.msra.mxu0 0.0
    %66 = vmatprep.subr.mxu0 0.0
    %67 = vmatpush1.msra.mxu0 0.0
    %68 = vmatprep.subr.mxu0 0.0
    %69 = vmatpush1.msra.mxu0 0.0
    %70 = vmatprep.subr.mxu0 0.0
    %71 = vmatpush1.msra.mxu0 0.0
    %72 = vmatprep.subr.mxu0 0.0
    %73 = vmatpush1.msra.mxu0 0.0
    %74 = vmatprep.subr.mxu0 0.0
    %75 = vmatpush1.msra.mxu0 0.0
    %76 = vmatprep.subr.mxu0 0.0
    %77 = vmatpush1.msra.mxu0 0.0
    %78 = vmatprep.subr.mxu0 0.0
    %79 = vmatpush1.msra.mxu0 0.0
    %80 = vmatprep.subr.mxu0 0.0
    %81 = vmatpush1.msra.mxu0 0.0
    %82 = vmatprep.subr.mxu0 0.0
    %83 = vmatpush1.msra.mxu0 0.0
    %84 = vmatprep.subr.mxu0 0.0
    %v85 = vand.u32 %v57, 4294901760
    %86 = vmatpush1.msra.mxu0 %v85
    %87 = vmatprep.subr.mxu0 0.0
    %v88 = vand.u32 %v56, 4294901760
    %89 = vmatpush1.msra.mxu0 %v88
    %90 = vmatprep.subr.mxu0 0.0
    %v91 = vand.u32 %v55, 4294901760
    %92 = vmatpush1.msra.mxu0 %v91
    %93 = vmatprep.subr.mxu0 0.0
    %v94 = vand.u32 %v54, 4294901760
    %95 = vmatpush1.msra.mxu0 %v94
    %96 = vmatprep.subr.mxu0 0.0
    %v97 = vand.u32 %v53, 4294901760
    %98 = vmatpush1.msra.mxu0 %v97
    %99 = vmatprep.subr.mxu0 0.0
    %100 = vmatpush2.msra.mxu0 0.0
    %101 = vmatprep.subr.mxu0 0.0
    %102 = vmatpush2.msra.mxu0 0.0
    %103 = vmatprep.subr.mxu0 0.0
    %104 = vmatpush2.msra.mxu0 0.0
    %105 = vmatprep.subr.mxu0 0.0
    %106 = vmatpush2.msra.mxu0 0.0
    %107 = vmatprep.subr.mxu0 0.0
    %108 = vmatpush2.msra.mxu0 0.0
    %109 = vmatprep.subr.mxu0 0.0
    %110 = vmatpush2.msra.mxu0 0.0
    %111 = vmatprep.subr.mxu0 0.0
    %112 = vmatpush2.msra.mxu0 0.0
    %113 = vmatprep.subr.mxu0 0.0
    %114 = vmatpush2.msra.mxu0 0.0
    %115 = vmatprep.subr.mxu0 0.0
    %116 = vmatpush2.msra.mxu0 0.0
    %117 = vmatprep.subr.mxu0 0.0
    %118 = vmatpush2.msra.mxu0 0.0
    %119 = vmatprep.subr.mxu0 0.0
    %120 = vmatpush2.msra.mxu0 0.0
    %121 = vmatprep.subr.mxu0 0.0
    %122 = vmatpush2.msra.mxu0 0.0
    %123 = vmatprep.subr.mxu0 0.0
    %124 = vmatpush2.msra.mxu0 0.0
    %125 = vmatprep.subr.mxu0 0.0
    %126 = vmatpush2.msra.mxu0 0.0
    %127 = vmatprep.subr.mxu0 0.0
    %128 = vmatpush2.msra.mxu0 0.0
    %129 = vmatprep.subr.mxu0 0.0
    %130 = vmatpush2.msra.mxu0 0.0
    %131 = vmatprep.mubr.f32.mxu0 0.0
    %v132 = vand.u32 %v60, 4294901760
    %v133 = vsub.f32 %v60, %v132
    %v134 = vand.u32 %v133, 4294901760
    %v135 = vsub.f32 %v133, %v134
    %v136 = vand.u32 %v135, 4294901760
    %137 = vmatmul.mubr.f32.gmra.mxu0 %v136
    %v138 = vpop.f32.mrf.mxu0
    %v139 = vadd.f32 0.0, %v138
    %v140 = vpop.f32.mrf.mxu0
    %141 = vdwg.mxu0
    %142 = vmatprep.subr.mxu0 0.0
    %143 = vmatpush1.msra.mxu0 0.0
    %144 = vmatprep.subr.mxu0 0.0
    %145 = vmatpush1.msra.mxu0 0.0
    %146 = vmatprep.subr.mxu0 0.0
    %147 = vmatpush1.msra.mxu0 0.0
    %148 = vmatprep.subr.mxu0 0.0
    %149 = vmatpush1.msra.mxu0 0.0
    %150 = vmatprep.subr.mxu0 0.0
    %151 = vmatpush1.msra.mxu0 0.0
    %152 = vmatprep.subr.mxu0 0.0
    %153 = vmatpush1.msra.mxu0 0.0
    %154 = vmatprep.subr.mxu0 0.0
    %155 = vmatpush1.msra.mxu0 0.0
    %156 = vmatprep.subr.mxu0 0.0
    %157 = vmatpush1.msra.mxu0 0.0
    %158 = vmatprep.subr.mxu0 0.0
    %159 = vmatpush1.msra.mxu0 0.0
    %160 = vmatprep.subr.mxu0 0.0
    %161 = vmatpush1.msra.mxu0 0.0
    %162 = vmatprep.subr.mxu0 0.0
    %163 = vmatpush1.msra.mxu0 0.0
    %164 = vmatprep.subr.mxu0 0.0
    %v165 = vand.u32 %v57, 4294901760
    %v166 = vsub.f32 %v57, %v165
    %v167 = vand.u32 %v166, 4294901760
    %v168 = vsub.f32 %v166, %v167
    %v169 = vand.u32 %v168, 4294901760
    %170 = vmatpush1.msra.mxu0 %v169
    %171 = vmatprep.subr.mxu0 0.0
    %v172 = vand.u32 %v56, 4294901760
    %v173 = vsub.f32 %v56, %v172
    %v174 = vand.u32 %v173, 4294901760
    %v175 = vsub.f32 %v173, %v174
    %v176 = vand.u32 %v175, 4294901760
    %177 = vmatpush1.msra.mxu0 %v176
    %178 = vmatprep.subr.mxu0 0.0
    %v179 = vand.u32 %v55, 4294901760
    %v180 = vsub.f32 %v55, %v179
    %v181 = vand.u32 %v180, 4294901760
    %v182 = vsub.f32 %v180, %v181
    %v183 = vand.u32 %v182, 4294901760
    %184 = vmatpush1.msra.mxu0 %v183
    %185 = vmatprep.subr.mxu0 0.0
    %v186 = vand.u32 %v54, 4294901760
    %v187 = vsub.f32 %v54, %v186
    %v188 = vand.u32 %v187, 4294901760
    %v189 = vsub.f32 %v187, %v188
    %v190 = vand.u32 %v189, 4294901760
    %191 = vmatpush1.msra.mxu0 %v190
    %192 = vmatprep.subr.mxu0 0.0
    %v193 = vand.u32 %v53, 4294901760
    %v194 = vsub.f32 %v53, %v193
    %v195 = vand.u32 %v194, 4294901760
    %v196 = vsub.f32 %v194, %v195
    %v197 = vand.u32 %v196, 4294901760
    %198 = vmatpush1.msra.mxu0 %v197
    %199 = vmatprep.subr.mxu0 0.0
    %200 = vmatpush2.msra.mxu0 0.0
    %201 = vmatprep.subr.mxu0 0.0
    %202 = vmatpush2.msra.mxu0 0.0
    %203 = vmatprep.subr.mxu0 0.0
    %204 = vmatpush2.msra.mxu0 0.0
    %205 = vmatprep.subr.mxu0 0.0
    %206 = vmatpush2.msra.mxu0 0.0
    %207 = vmatprep.subr.mxu0 0.0
    %208 = vmatpush2.msra.mxu0 0.0
    %209 = vmatprep.subr.mxu0 0.0
    %210 = vmatpush2.msra.mxu0 0.0
    %211 = vmatprep.subr.mxu0 0.0
    %212 = vmatpush2.msra.mxu0 0.0
    %213 = vmatprep.subr.mxu0 0.0
    %214 = vmatpush2.msra.mxu0 0.0
    %215 = vmatprep.subr.mxu0 0.0
    %216 = vmatpush2.msra.mxu0 0.0
    %217 = vmatprep.subr.mxu0 0.0
    %218 = vmatpush2.msra.mxu0 0.0
    %219 = vmatprep.subr.mxu0 0.0
    %220 = vmatpush2.msra.mxu0 0.0
    %221 = vmatprep.subr.mxu0 0.0
    %222 = vmatpush2.msra.mxu0 0.0
    %223 = vmatprep.subr.mxu0 0.0
    %224 = vmatpush2.msra.mxu0 0.0
    %225 = vmatprep.subr.mxu0 0.0
    %226 = vmatpush2.msra.mxu0 0.0
    %227 = vmatprep.subr.mxu0 0.0
    %228 = vmatpush2.msra.mxu0 0.0
    %229 = vmatprep.subr.mxu0 0.0
    %230 = vmatpush2.msra.mxu0 0.0
    %231 = vmatprep.mubr.f32.mxu0 0.0
    %v232 = vand.u32 %v60, 4294901760
    %233 = vmatmul.mubr.f32.gmra.mxu0 %v232
    %v234 = vpop.f32.mrf.mxu0
    %v235 = vadd.f32 %v139, %v234
    %v236 = vpop.f32.mrf.mxu0
    %237 = vdwg.mxu0
    %238 = vmatprep.subr.mxu0 0.0
    %239 = vmatpush1.msra.mxu0 0.0
    %240 = vmatprep.subr.mxu0 0.0
    %241 = vmatpush1.msra.mxu0 0.0
    %242 = vmatprep.subr.mxu0 0.0
    %243 = vmatpush1.msra.mxu0 0.0
    %244 = vmatprep.subr.mxu0 0.0
    %245 = vmatpush1.msra.mxu0 0.0
    %246 = vmatprep.subr.mxu0 0.0
    %247 = vmatpush1.msra.mxu0 0.0
    %248 = vmatprep.subr.mxu0 0.0
    %249 = vmatpush1.msra.mxu0 0.0
    %250 = vmatprep.subr.mxu0 0.0
    %251 = vmatpush1.msra.mxu0 0.0
    %252 = vmatprep.subr.mxu0 0.0
    %253 = vmatpush1.msra.mxu0 0.0
    %254 = vmatprep.subr.mxu0 0.0
    %255 = vmatpush1.msra.mxu0 0.0
    %256 = vmatprep.subr.mxu0 0.0
    %257 = vmatpush1.msra.mxu0 0.0
    %258 = vmatprep.subr.mxu0 0.0
    %259 = vmatpush1.msra.mxu0 0.0
    %260 = vmatprep.subr.mxu0 0.0
    %v261 = vand.u32 %v57, 4294901760
    %v262 = vsub.f32 %v57, %v261
    %263 = vmatpush1.msra.mxu0 %v262
    %264 = vmatprep.subr.mxu0 0.0
    %v265 = vand.u32 %v56, 4294901760
    %v266 = vsub.f32 %v56, %v265
    %267 = vmatpush1.msra.mxu0 %v266
    %268 = vmatprep.subr.mxu0 0.0
    %v269 = vand.u32 %v55, 4294901760
    %v270 = vsub.f32 %v55, %v269
    %271 = vmatpush1.msra.mxu0 %v270
    %272 = vmatprep.subr.mxu0 0.0
    %v273 = vand.u32 %v54, 4294901760
    %v274 = vsub.f32 %v54, %v273
    %275 = vmatpush1.msra.mxu0 %v274
    %276 = vmatprep.subr.mxu0 0.0
    %v277 = vand.u32 %v53, 4294901760
    %v278 = vsub.f32 %v53, %v277
    %279 = vmatpush1.msra.mxu0 %v278
    %280 = vmatprep.subr.mxu0 0.0
    %281 = vmatpush2.msra.mxu0 0.0
    %282 = vmatprep.subr.mxu0 0.0
    %283 = vmatpush2.msra.mxu0 0.0
    %284 = vmatprep.subr.mxu0 0.0
    %285 = vmatpush2.msra.mxu0 0.0
    %286 = vmatprep.subr.mxu0 0.0
    %287 = vmatpush2.msra.mxu0 0.0
    %288 = vmatprep.subr.mxu0 0.0
    %289 = vmatpush2.msra.mxu0 0.0
    %290 = vmatprep.subr.mxu0 0.0
    %291 = vmatpush2.msra.mxu0 0.0
    %292 = vmatprep.subr.mxu0 0.0
    %293 = vmatpush2.msra.mxu0 0.0
    %294 = vmatprep.subr.mxu0 0.0
    %295 = vmatpush2.msra.mxu0 0.0
    %296 = vmatprep.subr.mxu0 0.0
    %297 = vmatpush2.msra.mxu0 0.0
    %298 = vmatprep.subr.mxu0 0.0
    %299 = vmatpush2.msra.mxu0 0.0
    %300 = vmatprep.subr.mxu0 0.0
    %301 = vmatpush2.msra.mxu0 0.0
    %302 = vmatprep.subr.mxu0 0.0
    %303 = vmatpush2.msra.mxu0 0.0
    %304 = vmatprep.subr.mxu0 0.0
    %305 = vmatpush2.msra.mxu0 0.0
    %306 = vmatprep.subr.mxu0 0.0
    %307 = vmatpush2.msra.mxu0 0.0
    %308 = vmatprep.subr.mxu0 0.0
    %309 = vmatpush2.msra.mxu0 0.0
    %310 = vmatprep.subr.mxu0 0.0
    %311 = vmatpush2.msra.mxu0 0.0
    %312 = vmatprep.mubr.f32.mxu0 0.0
    %v313 = vand.u32 %v60, 4294901760
    %v314 = vsub.f32 %v60, %v313
    %315 = vmatmul.mubr.f32.gmra.mxu0 %v314
    %v316 = vpop.f32.mrf.mxu0
    %v317 = vadd.f32 %v235, %v316
    %v318 = vpop.f32.mrf.mxu0
    %319 = vdwg.mxu0
    %320 = vmatprep.subr.mxu0 0.0
    %321 = vmatpush1.msra.mxu0 0.0
    %322 = vmatprep.subr.mxu0 0.0
    %323 = vmatpush1.msra.mxu0 0.0
    %324 = vmatprep.subr.mxu0 0.0
    %325 = vmatpush1.msra.mxu0 0.0
    %326 = vmatprep.subr.mxu0 0.0
    %327 = vmatpush1.msra.mxu0 0.0
    %328 = vmatprep.subr.mxu0 0.0
    %329 = vmatpush1.msra.mxu0 0.0
    %330 = vmatprep.subr.mxu0 0.0
    %331 = vmatpush1.msra.mxu0 0.0
    %332 = vmatprep.subr.mxu0 0.0
    %333 = vmatpush1.msra.mxu0 0.0
    %334 = vmatprep.subr.mxu0 0.0
    %335 = vmatpush1.msra.mxu0 0.0
    %336 = vmatprep.subr.mxu0 0.0
    %337 = vmatpush1.msra.mxu0 0.0
    %338 = vmatprep.subr.mxu0 0.0
    %339 = vmatpush1.msra.mxu0 0.0
    %340 = vmatprep.subr.mxu0 0.0
    %341 = vmatpush1.msra.mxu0 0.0
    %342 = vmatprep.subr.mxu0 0.0
    %v343 = vand.u32 %v57, 4294901760
    %344 = vmatpush1.msra.mxu0 %v343
    %345 = vmatprep.subr.mxu0 0.0
    %v346 = vand.u32 %v56, 4294901760
    %347 = vmatpush1.msra.mxu0 %v346
    %348 = vmatprep.subr.mxu0 0.0
    %v349 = vand.u32 %v55, 4294901760
    %350 = vmatpush1.msra.mxu0 %v349
    %351 = vmatprep.subr.mxu0 0.0
    %v352 = vand.u32 %v54, 4294901760
    %353 = vmatpush1.msra.mxu0 %v352
    %354 = vmatprep.subr.mxu0 0.0
    %v355 = vand.u32 %v53, 4294901760
    %356 = vmatpush1.msra.mxu0 %v355
    %357 = vmatprep.subr.mxu0 0.0
    %358 = vmatpush2.msra.mxu0 0.0
    %359 = vmatprep.subr.mxu0 0.0
    %360 = vmatpush2.msra.mxu0 0.0
    %361 = vmatprep.subr.mxu0 0.0
    %362 = vmatpush2.msra.mxu0 0.0
    %363 = vmatprep.subr.mxu0 0.0
    %364 = vmatpush2.msra.mxu0 0.0
    %365 = vmatprep.subr.mxu0 0.0
    %366 = vmatpush2.msra.mxu0 0.0
    %367 = vmatprep.subr.mxu0 0.0
    %368 = vmatpush2.msra.mxu0 0.0
    %369 = vmatprep.subr.mxu0 0.0
    %370 = vmatpush2.msra.mxu0 0.0
    %371 = vmatprep.subr.mxu0 0.0
    %372 = vmatpush2.msra.mxu0 0.0
    %373 = vmatprep.subr.mxu0 0.0
    %374 = vmatpush2.msra.mxu0 0.0
    %375 = vmatprep.subr.mxu0 0.0
    %376 = vmatpush2.msra.mxu0 0.0
    %377 = vmatprep.subr.mxu0 0.0
    %378 = vmatpush2.msra.mxu0 0.0
    %379 = vmatprep.subr.mxu0 0.0
    %380 = vmatpush2.msra.mxu0 0.0
    %381 = vmatprep.subr.mxu0 0.0
    %382 = vmatpush2.msra.mxu0 0.0
    %383 = vmatprep.subr.mxu0 0.0
    %384 = vmatpush2.msra.mxu0 0.0
    %385 = vmatprep.subr.mxu0 0.0
    %386 = vmatpush2.msra.mxu0 0.0
    %387 = vmatprep.subr.mxu0 0.0
    %388 = vmatpush2.msra.mxu0 0.0
    %389 = vmatprep.mubr.f32.mxu0 0.0
    %v390 = vand.u32 %v60, 4294901760
    %v391 = vsub.f32 %v60, %v390
    %v392 = vand.u32 %v391, 4294901760
    %393 = vmatmul.mubr.f32.gmra.mxu0 %v392
    %v394 = vpop.f32.mrf.mxu0
    %v395 = vadd.f32 %v317, %v394
    %v396 = vpop.f32.mrf.mxu0
    %397 = vdwg.mxu0
    %398 = vmatprep.subr.mxu0 0.0
    %399 = vmatpush1.msra.mxu0 0.0
    %400 = vmatprep.subr.mxu0 0.0
    %401 = vmatpush1.msra.mxu0 0.0
    %402 = vmatprep.subr.mxu0 0.0
    %403 = vmatpush1.msra.mxu0 0.0
    %404 = vmatprep.subr.mxu0 0.0
    %405 = vmatpush1.msra.mxu0 0.0
    %406 = vmatprep.subr.mxu0 0.0
    %407 = vmatpush1.msra.mxu0 0.0
    %408 = vmatprep.subr.mxu0 0.0
    %409 = vmatpush1.msra.mxu0 0.0
    %410 = vmatprep.subr.mxu0 0.0
    %411 = vmatpush1.msra.mxu0 0.0
    %412 = vmatprep.subr.mxu0 0.0
    %413 = vmatpush1.msra.mxu0 0.0
    %414 = vmatprep.subr.mxu0 0.0
    %415 = vmatpush1.msra.mxu0 0.0
    %416 = vmatprep.subr.mxu0 0.0
    %417 = vmatpush1.msra.mxu0 0.0
    %418 = vmatprep.subr.mxu0 0.0
    %419 = vmatpush1.msra.mxu0 0.0
    %420 = vmatprep.subr.mxu0 0.0
    %v421 = vand.u32 %v57, 4294901760
    %v422 = vsub.f32 %v57, %v421
    %v423 = vand.u32 %v422, 4294901760
    %424 = vmatpush1.msra.mxu0 %v423
    %425 = vmatprep.subr.mxu0 0.0
    %v426 = vand.u32 %v56, 4294901760
    %v427 = vsub.f32 %v56, %v426
    %v428 = vand.u32 %v427, 4294901760
    %429 = vmatpush1.msra.mxu0 %v428
    %430 = vmatprep.subr.mxu0 0.0
    %v431 = vand.u32 %v55, 4294901760
    %v432 = vsub.f32 %v55, %v431
    %v433 = vand.u32 %v432, 4294901760
    %434 = vmatpush1.msra.mxu0 %v433
    %435 = vmatprep.subr.mxu0 0.0
    %v436 = vand.u32 %v54, 4294901760
    %v437 = vsub.f32 %v54, %v436
    %v438 = vand.u32 %v437, 4294901760
    %439 = vmatpush1.msra.mxu0 %v438
    %440 = vmatprep.subr.mxu0 0.0
    %v441 = vand.u32 %v53, 4294901760
    %v442 = vsub.f32 %v53, %v441
    %v443 = vand.u32 %v442, 4294901760
    %444 = vmatpush1.msra.mxu0 %v443
    %445 = vmatprep.subr.mxu0 0.0
    %446 = vmatpush2.msra.mxu0 0.0
    %447 = vmatprep.subr.mxu0 0.0
    %448 = vmatpush2.msra.mxu0 0.0
    %449 = vmatprep.subr.mxu0 0.0
    %450 = vmatpush2.msra.mxu0 0.0
    %451 = vmatprep.subr.mxu0 0.0
    %452 = vmatpush2.msra.mxu0 0.0
    %453 = vmatprep.subr.mxu0 0.0
    %454 = vmatpush2.msra.mxu0 0.0
    %455 = vmatprep.subr.mxu0 0.0
    %456 = vmatpush2.msra.mxu0 0.0
    %457 = vmatprep.subr.mxu0 0.0
    %458 = vmatpush2.msra.mxu0 0.0
    %459 = vmatprep.subr.mxu0 0.0
    %460 = vmatpush2.msra.mxu0 0.0
    %461 = vmatprep.subr.mxu0 0.0
    %462 = vmatpush2.msra.mxu0 0.0
    %463 = vmatprep.subr.mxu0 0.0
    %464 = vmatpush2.msra.mxu0 0.0
    %465 = vmatprep.subr.mxu0 0.0
    %466 = vmatpush2.msra.mxu0 0.0
    %467 = vmatprep.subr.mxu0 0.0
    %468 = vmatpush2.msra.mxu0 0.0
    %469 = vmatprep.subr.mxu0 0.0
    %470 = vmatpush2.msra.mxu0 0.0
    %471 = vmatprep.subr.mxu0 0.0
    %472 = vmatpush2.msra.mxu0 0.0
    %473 = vmatprep.subr.mxu0 0.0
    %474 = vmatpush2.msra.mxu0 0.0
    %475 = vmatprep.subr.mxu0 0.0
    %476 = vmatpush2.msra.mxu0 0.0
    %477 = vmatprep.mubr.f32.mxu0 0.0
    %v478 = vand.u32 %v60, 4294901760
    %479 = vmatmul.mubr.f32.gmra.mxu0 %v478
    %v480 = vpop.f32.mrf.mxu0
    %v481 = vadd.f32 %v395, %v480
    %v482 = vpop.f32.mrf.mxu0
    %483 = vdwg.mxu0
    %484 = vmatprep.subr.mxu0 0.0
    %485 = vmatpush1.msra.mxu0 0.0
    %486 = vmatprep.subr.mxu0 0.0
    %487 = vmatpush1.msra.mxu0 0.0
    %488 = vmatprep.subr.mxu0 0.0
    %489 = vmatpush1.msra.mxu0 0.0
    %490 = vmatprep.subr.mxu0 0.0
    %491 = vmatpush1.msra.mxu0 0.0
    %492 = vmatprep.subr.mxu0 0.0
    %493 = vmatpush1.msra.mxu0 0.0
    %494 = vmatprep.subr.mxu0 0.0
    %495 = vmatpush1.msra.mxu0 0.0
    %496 = vmatprep.subr.mxu0 0.0
    %497 = vmatpush1.msra.mxu0 0.0
    %498 = vmatprep.subr.mxu0 0.0
    %499 = vmatpush1.msra.mxu0 0.0
    %500 = vmatprep.subr.mxu0 0.0
    %501 = vmatpush1.msra.mxu0 0.0
    %502 = vmatprep.subr.mxu0 0.0
    %503 = vmatpush1.msra.mxu0 0.0
    %504 = vmatprep.subr.mxu0 0.0
    %505 = vmatpush1.msra.mxu0 0.0
    %506 = vmatprep.subr.mxu0 0.0
    %v507 = vand.u32 %v57, 4294901760
    %508 = vmatpush1.msra.mxu0 %v507
    %509 = vmatprep.subr.mxu0 0.0
    %v510 = vand.u32 %v56, 4294901760
    %511 = vmatpush1.msra.mxu0 %v510
    %512 = vmatprep.subr.mxu0 0.0
    %v513 = vand.u32 %v55, 4294901760
    %514 = vmatpush1.msra.mxu0 %v513
    %515 = vmatprep.subr.mxu0 0.0
    %v516 = vand.u32 %v54, 4294901760
    %517 = vmatpush1.msra.mxu0 %v516
    %518 = vmatprep.subr.mxu0 0.0
    %v519 = vand.u32 %v53, 4294901760
    %520 = vmatpush1.msra.mxu0 %v519
    %521 = vmatprep.subr.mxu0 0.0
    %522 = vmatpush2.msra.mxu0 0.0
    %523 = vmatprep.subr.mxu0 0.0
    %524 = vmatpush2.msra.mxu0 0.0
    %525 = vmatprep.subr.mxu0 0.0
    %526 = vmatpush2.msra.mxu0 0.0
    %527 = vmatprep.subr.mxu0 0.0
    %528 = vmatpush2.msra.mxu0 0.0
    %529 = vmatprep.subr.mxu0 0.0
    %530 = vmatpush2.msra.mxu0 0.0
    %531 = vmatprep.subr.mxu0 0.0
    %532 = vmatpush2.msra.mxu0 0.0
    %533 = vmatprep.subr.mxu0 0.0
    %534 = vmatpush2.msra.mxu0 0.0
    %535 = vmatprep.subr.mxu0 0.0
    %536 = vmatpush2.msra.mxu0 0.0
    %537 = vmatprep.subr.mxu0 0.0
    %538 = vmatpush2.msra.mxu0 0.0
    %539 = vmatprep.subr.mxu0 0.0
    %540 = vmatpush2.msra.mxu0 0.0
    %541 = vmatprep.subr.mxu0 0.0
    %542 = vmatpush2.msra.mxu0 0.0
    %543 = vmatprep.subr.mxu0 0.0
    %544 = vmatpush2.msra.mxu0 0.0
    %545 = vmatprep.subr.mxu0 0.0
    %546 = vmatpush2.msra.mxu0 0.0
    %547 = vmatprep.subr.mxu0 0.0
    %548 = vmatpush2.msra.mxu0 0.0
    %549 = vmatprep.subr.mxu0 0.0
    %550 = vmatpush2.msra.mxu0 0.0
    %551 = vmatprep.subr.mxu0 0.0
    %552 = vmatpush2.msra.mxu0 0.0
    %553 = vmatprep.mubr.f32.mxu0 0.0
    %v554 = vand.u32 %v60, 4294901760
    %555 = vmatmul.mubr.f32.gmra.mxu0 %v554
    %v556 = vpop.f32.mrf.mxu0
    %v557 = vadd.f32 %v481, %v556
    %v558 = vpop.f32.mrf.mxu0
    %559 = vdwg.mxu0
    %v560 = vrot.slane %v557, 4
    %v561 = vmax.f32 %v557, %v560
    %v562 = vrot.slane %v561, 2
    %v563 = vmax.f32 %v561, %v562
    %v564 = vrot.slane %v563, 1
    %v565 = vmax.f32 %v563, %v564
    %vm566 = vcmp.ge.f32.partialorder %v557, %v565
    %v567 = vsel %vm566, 1, 0
    %v568 = vcvt.s32.f32 %v567
    %v569 = vsub.f32 1.0, %v568
    %v571 = vrot.slane %v569, 7
    %v573 = vmul.f32 %v568, %v571
    %vm574 = vcmask 1040384
    %v575 = vsel %vm574, %v568, 0.0
    %576 = vadd.xlane.f32.xlu0 %v575
    %v577 = vpop.xlane.xlu0 %576
    %v578 = vmul.f32 %v577, 0.0078125
    %vm579 = vcmask 1041409
    %v580 = vsel %vm579, %v573, 0.0
    %581 = vadd.xlane.f32.xlu0 %v580
    %v582 = vpop.xlane.xlu0 %581
    %v583 = vmul.f32 %v582, 0.0078125
    %v584 = vld [vmem:[#allocation7] sm:$0x1]
    %v585 = vld [vmem:[#allocation7 + $0x1] sm:$0x1]
    %v586 = vld [vmem:[#allocation7 + $0x2] sm:$0x1]
    %v587 = vld [vmem:[#allocation7 + $0x3] sm:$0x1]
    %v588 = vld [vmem:[#allocation7 + $0x4] sm:$0x1]
    %v589 = vmul.f32 %v578, %v584
    %v591 = vrot.slane %v585, 7
    %v593 = vmul.f32 %v583, %v591
    %v595 = vrot.slane %v593, 1
    %v597 = vadd.f32 %v589, %v595
    %v598 = vadd.f32 %v597, %v586
    %v599 = vmax.f32 %v598, 0.0
    %v600 = vmul.f32 %v599, %v587
    %vm601 = vcmask 253952
    %v602 = vsel %vm601, %v600, 0.0
    %603 = vadd.xlane.f32.xlu0 %v602
    %v604 = vpop.xlane.xlu0 %603
    %v605 = vadd.f32 %v604, %v588
    %vm606 = vcmask 0
    %607 = vst.msk [vmem:[#allocation8] sm:$0x1] %vm606, %v605
    // Predicated region
    $region26: #{tpu_custom_call.1} parent=1 // pred_check
      _
    $region27: #{tpu_custom_call.1} parent=1 // pred_check_branch
      %609 = sbr.rel (0) target = $region29
    $region28: #{tpu_custom_call.1} parent=1 // pred_region
      %s611 = ssub.s32 16, 16
      %612 = vsyncadd [#allocation4], %s611
      %s614 = sshll.u32 [#allocation8], 4
      %s615 = int_to_ptr.vmem [resolvable:$true] %s614
      %617 = dma.vmem_to_hbm [thread:$0]  %s615, 16, %s3, [#allocation4]
    $region29: #{tpu_custom_call.1} parent=1 // pred_fallthru
      _
    // Predicated region
    $region30: #{tpu_custom_call.1} parent=1 // pred_check
      _
    $region31: #{tpu_custom_call.1} parent=1 // pred_check_branch
      %619 = sbr.rel (0) target = $region33
    $region32: #{tpu_custom_call.1} parent=1 // pred_region
      %620 = dma.done [#allocation4], 16
    $region33: #{tpu_custom_call.1} parent=1 // pred_fallthru
      _
    %621 = vsyncpa [#allocation3], 1
    %622 = vsyncpa [#allocation6], 1
    %623 = vsyncpa [#allocation4], 1

</llo_original>
